<compile_context>
chip_gen: v6e
topology: v6e:2x2x1
jax: 0.10.0
libtpu: 0.0.40
codegen_flags: <defaults>
</compile_context>

<pallas_src>
import functools

import jax
import jax.numpy as jnp
from jax.experimental import pallas as pl
from jax.experimental.pallas import tpu as pltpu

GAMMA = 1.5   # kernel specializes the power as m*sqrt(m) for gamma == 1.5
ALPHA = 0.25
LANES = 128


def _focal_loss_kernel(pred_ref, true_ref, out_ref, *, tile_rows, total_elems):
    """One grid step: compute focal loss on a (tile_rows, 128) tile and emit an
    (1, 8, 128) partial sum.  `total_elems` is None when no padding exists."""
    i = pl.program_id(0)

    x = pred_ref[...].astype(jnp.float32)
    y = true_ref[...].astype(jnp.float32)

    # Shared transcendental chain:
    #   e   = exp(-|x|)
    #   bce = max(x,0) - x*y + log1p(e)                (stable BCEWithLogits)
    #   sigmoid(x) = 1/(1+e) if x>=0 else e/(1+e)      (reuses the same e)
    e = jnp.exp(-jnp.abs(x))
    bce = jnp.maximum(x, 0.0) - x * y + jnp.log1p(e)
    r = 1.0 / (1.0 + e)
    p = jnp.where(x >= 0.0, r, e * r)

    alpha_factor = y * ALPHA + (1.0 - y) * (1.0 - ALPHA)
    # m = 1 - p_t = y*(1-p) + (1-y)*p
    m = y * (1.0 - p) + (1.0 - y) * p
    # gamma = 1.5  =>  m**1.5 == m * sqrt(m);  sqrt(0) == 0, no guard needed.
    modulating = m * jnp.sqrt(m)

    loss = bce * alpha_factor * modulating

    if total_elems is not None:
        # Mask out zero-padded tail so reduction='mean' stays exact.
        row_idx = jax.lax.broadcasted_iota(jnp.int32, (tile_rows, LANES), 0)
        lane_idx = jax.lax.broadcasted_iota(jnp.int32, (tile_rows, LANES), 1)
        elem_idx = (i * tile_rows + row_idx) * LANES + lane_idx
        loss = jnp.where(elem_idx < total_elems, loss, 0.0)

    # Leading-axis-only reduction (VPU adds over tile_rows//8 vregs, no
    # cross-lane work); the final cross-lane sum happens outside the kernel.
    partial = loss.reshape(tile_rows // 8, 8, LANES).sum(axis=0)
    out_ref[...] = partial[None]


def _round_up(n, m):
    return ((n + m - 1) // m) * m


def focal_loss(pred, true, *, tile_rows=1024):
    """pred/true: float tensors of identical (e.g. NCHW) shape.
    Returns scalar mean focal loss (gamma=1.5, alpha=0.25)."""
    assert pred.shape == true.shape
    total = pred.size

    rows = _round_up(pl.cdiv(total, LANES), 8)          # rows of 128 lanes
    tile_rows = min(tile_rows, rows)                    # shrink for tiny inputs
    tile_rows = _round_up(tile_rows, 8)
    num_blocks = pl.cdiv(rows, tile_rows)
    padded_rows = num_blocks * tile_rows
    padded_total = padded_rows * LANES

    def _to_slab(a):
        flat = a.reshape(-1)
        if padded_total != total:
            flat = jnp.pad(flat, (0, padded_total - total))
        return flat.reshape(padded_rows, LANES)

    pred2d = _to_slab(pred)   # kept in input dtype (bf16 inputs halve HBM reads)
    true2d = _to_slab(true)

    kernel = functools.partial(
        _focal_loss_kernel,
        tile_rows=tile_rows,
        total_elems=None if padded_total == total else total,
    )

    partials = pl.pallas_call(
        kernel,
        out_shape=jax.ShapeDtypeStruct((num_blocks, 8, LANES), jnp.float32),
        grid_spec=pltpu.PrefetchScalarGridSpec(
            num_scalar_prefetch=0,
            grid=(num_blocks,),
            in_specs=[
                pl.BlockSpec((tile_rows, LANES), lambda i: (i, 0)),
                pl.BlockSpec((tile_rows, LANES), lambda i: (i, 0)),
            ],
            out_specs=pl.BlockSpec((1, 8, LANES), lambda i: (i, 0, 0)),
        ),
        compiler_params=pltpu.CompilerParams(
            dimension_semantics=("parallel",),
        ),
    )(pred2d, true2d)

    # reduction == 'mean' : tiny final reduce + divide done outside the kernel.
    return jnp.sum(partials) / jnp.float32(total)


def focal_loss_ref(pred, true):
    x = pred.astype(jnp.float32)
    y = true.astype(jnp.float32)
    bce = jnp.maximum(x, 0.0) - x * y + jnp.log1p(jnp.exp(-jnp.abs(x)))
    p = jax.nn.sigmoid(x)
    p_t = y * p + (1 - y) * (1 - p)
    af = y * ALPHA + (1 - y) * (1 - ALPHA)
    return jnp.mean(bce * af * (1.0 - p_t) ** GAMMA)


if __name__ == "__main__":
    key = jax.random.PRNGKey(0)
    k1, k2 = jax.random.split(key)
    # NCHW: batch=2, channels=4, spatial=16x16
    pred = jax.random.normal(k1, (2, 4, 16, 16), dtype=jnp.float32) * 3.0
    true = (jax.random.uniform(k2, (2, 4, 16, 16)) > 0.7).astype(jnp.float32)

    out = focal_loss(pred, true)
    out = jax.block_until_ready(out)

    ref = focal_loss_ref(pred, true)
    assert jnp.allclose(out, ref, rtol=1e-4, atol=1e-6), (out, ref)

    # Also exercise a shape that needs padding + masking (odd element count).
    p3 = jax.random.normal(k1, (3, 5, 7, 9), dtype=jnp.float32)
    t3 = (jax.random.uniform(k2, (3, 5, 7, 9)) > 0.5).astype(jnp.float32)
    out3 = jax.block_until_ready(focal_loss(p3, t3))
    ref3 = focal_loss_ref(p3, t3)
    assert jnp.allclose(out3, ref3, rtol=1e-4, atol=1e-6), (out3, ref3)

    print("KERNEL_OK")
</pallas_src>

<mosaic_0001>
module attributes {stable_mosaic.version = 11 : i64} {
  func.func @_focal_loss_kernel(%arg0: i32, %arg1: memref<16x128xf32, #tpu.memory_space<vmem>>, %arg2: memref<16x128xf32, #tpu.memory_space<vmem>>, %arg3: memref<1x8x128xf32, #tpu.memory_space<vmem>>) attributes {dimension_semantics = [#tpu.dimension_semantics<parallel>], iteration_bounds = array<i64: 1>, scalar_prefetch = 0 : i64, scratch_operands = 0 : i64, tpu.core_type = #tpu.core_type<tc>, window_params = [{transform_indices = @transform_0, window_bounds = array<i64: 16, 128>}, {transform_indices = @transform_1, window_bounds = array<i64: 16, 128>}, {transform_indices = @transform_2, window_bounds = array<i64: 1, 8, 128>}]} {
    %c0 = arith.constant 0 : index
    %c0_0 = arith.constant 0 : index
    %0 = vector.load %arg1[%c0, %c0_0] : memref<16x128xf32, #tpu.memory_space<vmem>>, vector<16x128xf32>
    %c0_1 = arith.constant 0 : index
    %c0_2 = arith.constant 0 : index
    %1 = vector.load %arg2[%c0_1, %c0_2] : memref<16x128xf32, #tpu.memory_space<vmem>>, vector<16x128xf32>
    %2 = math.absf %0 : vector<16x128xf32>
    %cst = arith.constant 0.000000e+00 : f32
    %3 = vector.broadcast %cst : f32 to vector<16x128xf32>
    %4 = arith.subf %3, %2 : vector<16x128xf32>
    %5 = math.exp %4 : vector<16x128xf32>
    %cst_3 = arith.constant 0.000000e+00 : f32
    %6 = vector.broadcast %cst_3 : f32 to vector<16x128xf32>
    %7 = arith.maximumf %0, %6 : vector<16x128xf32>
    %8 = arith.mulf %0, %1 : vector<16x128xf32>
    %9 = arith.subf %7, %8 : vector<16x128xf32>
    %10 = math.log1p %5 : vector<16x128xf32>
    %11 = arith.addf %9, %10 : vector<16x128xf32>
    %cst_4 = arith.constant 1.000000e+00 : f32
    %12 = vector.broadcast %cst_4 : f32 to vector<16x128xf32>
    %13 = arith.addf %12, %5 : vector<16x128xf32>
    %cst_5 = arith.constant 1.000000e+00 : f32
    %14 = vector.broadcast %cst_5 : f32 to vector<16x128xf32>
    %15 = arith.divf %14, %13 : vector<16x128xf32>
    %cst_6 = arith.constant 0.000000e+00 : f32
    %16 = vector.broadcast %cst_6 : f32 to vector<16x128xf32>
    %17 = arith.cmpf oge, %0, %16 : vector<16x128xf32>
    %18 = arith.mulf %5, %15 : vector<16x128xf32>
    %19 = arith.select %17, %15, %18 : vector<16x128xi1>, vector<16x128xf32>
    %cst_7 = arith.constant 2.500000e-01 : f32
    %20 = vector.broadcast %cst_7 : f32 to vector<16x128xf32>
    %21 = arith.mulf %1, %20 : vector<16x128xf32>
    %cst_8 = arith.constant 1.000000e+00 : f32
    %22 = vector.broadcast %cst_8 : f32 to vector<16x128xf32>
    %23 = arith.subf %22, %1 : vector<16x128xf32>
    %cst_9 = arith.constant 7.500000e-01 : f32
    %24 = vector.broadcast %cst_9 : f32 to vector<16x128xf32>
    %25 = arith.mulf %23, %24 : vector<16x128xf32>
    %26 = arith.addf %21, %25 : vector<16x128xf32>
    %cst_10 = arith.constant 1.000000e+00 : f32
    %27 = vector.broadcast %cst_10 : f32 to vector<16x128xf32>
    %28 = arith.subf %27, %19 : vector<16x128xf32>
    %29 = arith.mulf %1, %28 : vector<16x128xf32>
    %cst_11 = arith.constant 1.000000e+00 : f32
    %30 = vector.broadcast %cst_11 : f32 to vector<16x128xf32>
    %31 = arith.subf %30, %1 : vector<16x128xf32>
    %32 = arith.mulf %31, %19 : vector<16x128xf32>
    %33 = arith.addf %29, %32 : vector<16x128xf32>
    %34 = math.sqrt %33 : vector<16x128xf32>
    %35 = arith.mulf %33, %34 : vector<16x128xf32>
    %36 = arith.mulf %11, %26 : vector<16x128xf32>
    %37 = arith.mulf %36, %35 : vector<16x128xf32>
    %38 = vector.shape_cast %37 : vector<16x128xf32> to vector<2x8x128xf32>
    %cst_12 = arith.constant dense<0.000000e+00> : vector<8x128xf32>
    %39 = vector.multi_reduction <add>, %38, %cst_12 [0] : vector<2x8x128xf32> to vector<8x128xf32>
    %40 = vector.shape_cast %39 : vector<8x128xf32> to vector<1x8x128xf32>
    %c0_13 = arith.constant 0 : index
    %c0_14 = arith.constant 0 : index
    %c0_15 = arith.constant 0 : index
    %41 = vector.load %arg3[%c0_13, %c0_14, %c0_15] : memref<1x8x128xf32, #tpu.memory_space<vmem>>, vector<1x8x128xf32>
    tpu.vector_store %arg3[%c0_13, %c0_14, %c0_15], %40 {strides = array<i32>} : memref<1x8x128xf32, #tpu.memory_space<vmem>>, vector<1x8x128xf32>,
    return
  }
  func.func @transform_0(%arg0: i32) -> (i32, i32) {
    %c0_i32 = arith.constant 0 : i32
    %c0_i32_0 = arith.constant 0 : i32
    return %arg0, %c0_i32 : i32, i32
  }
  func.func @transform_1(%arg0: i32) -> (i32, i32) {
    %c0_i32 = arith.constant 0 : i32
    %c0_i32_0 = arith.constant 0 : i32
    return %arg0, %c0_i32 : i32, i32
  }
  func.func @transform_2(%arg0: i32) -> (i32, i32, i32) {
    %c0_i32 = arith.constant 0 : i32
    %c0_i32_0 = arith.constant 0 : i32
    %c0_i32_1 = arith.constant 0 : i32
    return %arg0, %c0_i32, %c0_i32_0 : i32, i32, i32
  }
}

</mosaic_0001>

<llo_original>
// kernel: tpu_custom_call.1
$region0: #{tpu_custom_call.1}
  #allocation0 [shape = 'u32[]', space=smem, size = 0x4, offset = 0x4, fixed_abs, tag = 'smem constant byte address 0x4 - core index']
  #allocation1 [shape = 'u32[144,128]{1,0:T(1,128)}', space=vmem, size = 0x12000, scoped, tag = 'internal scratch']
  %s0 = inlined_call_operand.hbm [shape: f32[16,128], index: 0, kind: input, shape index: {}]
  %s1 = inlined_call_operand.hbm [shape: f32[16,128], index: 1, kind: input, shape index: {}]
  %s2 = inlined_call_operand.hbm [shape: f32[1,8,128], index: 2, kind: output, shape index: {}]
  %s3 = sld [smem:[#allocation0]]
  $region26: #{tpu_custom_call.1} parent=0
    _
  %s5 = ssub.s32 1, %s3
  %s6 = scalar_select 0, %s5, %s3
  $region1: #{tpu_custom_call.1} parent=0
    #allocation2 [shape = 'u8[8192]{0}', space=vmem, size = 0x2000, scoped, tag = 'input window, operand 0, single buffered']
    #allocation3 [shape = 's32[1]{0}', space=sflag, size = 0x4, scoped, tag = 'scoped memory for tpu_custom_call.1']
    #allocation4 [shape = 's32[1]{0}', space=sflag, size = 0x4, scoped, tag = 'scoped memory for tpu_custom_call.1']
    #allocation5 [shape = 'u8[8192]{0}', space=vmem, size = 0x2000, scoped, tag = 'input window, operand 1, single buffered']
    #allocation6 [shape = 's32[1]{0}', space=sflag, size = 0x4, scoped, tag = 'scoped memory for tpu_custom_call.1']
    #allocation7 [shape = 'u8[4096]{0}', space=vmem, size = 0x1000, scoped, tag = 'output window, operand 0, single buffered']
    %7 = vsyncpa [#allocation3], 0
    %8 = vsyncpa [#allocation6], 0
    %9 = vsyncpa [#allocation4], 0
    // Predicated region
    $region2: #{tpu_custom_call.1} parent=1 // pred_check
      _
    $region3: #{tpu_custom_call.1} parent=1 // pred_check_branch
      %11 = sbr.rel (0) target = $region5
    $region4: #{tpu_custom_call.1} parent=1 // pred_region
      %s13 = ssub.s32 256, 256
      %14 = vsyncadd [#allocation3], %s13
      %s15 = sshll.u32 [#allocation2], 4
      %s16 = int_to_ptr.vmem [resolvable:$true] %s15
      %21 = dma.hbm_to_vmem [thread:$0]  %s0, 256, %s16, [#allocation3], 128, 128, 8
    $region5: #{tpu_custom_call.1} parent=1 // pred_fallthru
      _
    // Predicated region
    $region6: #{tpu_custom_call.1} parent=1 // pred_check
      _
    $region7: #{tpu_custom_call.1} parent=1 // pred_check_branch
      %23 = sbr.rel (0) target = $region9
    $region8: #{tpu_custom_call.1} parent=1 // pred_region
      %s25 = ssub.s32 256, 256
      %26 = vsyncadd [#allocation6], %s25
      %s27 = sshll.u32 [#allocation5], 4
      %s28 = int_to_ptr.vmem [resolvable:$true] %s27
      %33 = dma.hbm_to_vmem [thread:$0]  %s1, 256, %s28, [#allocation6], 128, 128, 8
    $region9: #{tpu_custom_call.1} parent=1 // pred_fallthru
      _
    // Predicated region
    $region10: #{tpu_custom_call.1} parent=1 // pred_check
      _
    $region11: #{tpu_custom_call.1} parent=1 // pred_check_branch
      %35 = sbr.rel (0) target = $region13
    $region12: #{tpu_custom_call.1} parent=1 // pred_region
      %36 = dma.done [#allocation3], 256
    $region13: #{tpu_custom_call.1} parent=1 // pred_fallthru
      _
    // Predicated region
    $region14: #{tpu_custom_call.1} parent=1 // pred_check
      _
    $region15: #{tpu_custom_call.1} parent=1 // pred_check_branch
      %38 = sbr.rel (0) target = $region17
    $region16: #{tpu_custom_call.1} parent=1 // pred_region
      %39 = dma.done [#allocation6], 256
    $region17: #{tpu_custom_call.1} parent=1 // pred_fallthru
      _
    %v40 = vld [vmem:[#allocation2] sm:$0xff]
    %v41 = vld [vmem:[#allocation2 + $0x8] sm:$0xff]
    %v42 = vld [vmem:[#allocation5] sm:$0xff]
    %v43 = vld [vmem:[#allocation5 + $0x8] sm:$0xff]
    %v44 = vand.u32 2147483647, %v40
    %v45 = vand.u32 2147483647, %v41
    %v46 = vsub.f32 0.0, %v44
    %v47 = vsub.f32 0.0, %v45
    %v48 = vmul.f32 %v46, 1.442695
    %v49 = vpow.pop %v48
    %v50 = vmul.f32 %v47, 1.442695
    %v51 = vpow.pop %v50
    %v52 = vmax.f32 %v40, 0.0
    %v53 = vmax.f32 %v41, 0.0
    %v54 = vmul.f32 %v40, %v42
    %v55 = vmul.f32 %v41, %v43
    %v56 = vsub.f32 %v52, %v54
    %v57 = vsub.f32 %v53, %v55
    %v58 = vadd.f32 %v49, 1.0
    %v59 = vlog2.pop %v58
    %v60 = vmul.f32 %v59, 0.6931472
    %v61 = vmul.f32 -0.5, %v49
    %v62 = vadd.f32 %v61, 1.0
    %v63 = vmul.f32 %v62, %v49
    %v64 = vand.u32 2147483647, %v49
    %vm65 = vcmp.lt.f32.partialorder %v64, 0.0004427343
    %v66 = vsel %vm65, %v63, %v60
    %v67 = vadd.f32 %v51, 1.0
    %v68 = vlog2.pop %v67
    %v69 = vmul.f32 %v68, 0.6931472
    %v70 = vmul.f32 -0.5, %v51
    %v71 = vadd.f32 %v70, 1.0
    %v72 = vmul.f32 %v71, %v51
    %v73 = vand.u32 2147483647, %v51
    %vm74 = vcmp.lt.f32.partialorder %v73, 0.0004427343
    %v75 = vsel %vm74, %v72, %v69
    %v76 = vadd.f32 %v56, %v66
    %v77 = vadd.f32 %v57, %v75
    %v78 = vadd.f32 %v49, 1.0
    %v79 = vadd.f32 %v51, 1.0
    %v80 = vrcp.pop %v78
    %v81 = vmul.f32 1.0, %v80
    %v82 = vrcp.pop %v79
    %v83 = vmul.f32 1.0, %v82
    %vm84 = vcmp.ge.f32.partialorder %v40, 0.0
    %vm85 = vcmp.ge.f32.partialorder %v41, 0.0
    %v86 = vmul.f32 %v49, %v81
    %v87 = vmul.f32 %v51, %v83
    %v88 = vsel %vm84, %v81, %v86
    %v89 = vsel %vm85, %v83, %v87
    %v90 = vmul.f32 %v42, 0.25
    %v91 = vmul.f32 %v43, 0.25
    %v92 = vsub.f32 1.0, %v42
    %v93 = vsub.f32 1.0, %v43
    %v94 = vmul.f32 %v92, 0.75
    %v95 = vmul.f32 %v93, 0.75
    %v96 = vadd.f32 %v90, %v94
    %v97 = vadd.f32 %v91, %v95
    %v98 = vsub.f32 1.0, %v88
    %v99 = vsub.f32 1.0, %v89
    %v100 = vmul.f32 %v42, %v98
    %v101 = vmul.f32 %v43, %v99
    %v102 = vmul.f32 %v92, %v88
    %v103 = vmul.f32 %v93, %v89
    %v104 = vadd.f32 %v100, %v102
    %v105 = vadd.f32 %v101, %v103
    %v106 = vrsqrt.pop %v104
    %v107 = vmul.f32 %v104, %v106
    %vm108 = vcmp.eq.f32.partialorder %v104, inf
    %v109 = vsel %vm108, %v104, %v107
    %vm110 = vcmp.eq.f32.partialorder %v104, 0.0
    %v111 = vand.u32 %v104, 2147483648
    %v112 = vsel %vm110, %v111, %v109
    %v113 = vrsqrt.pop %v105
    %v114 = vmul.f32 %v105, %v113
    %vm115 = vcmp.eq.f32.partialorder %v105, inf
    %v116 = vsel %vm115, %v105, %v114
    %vm117 = vcmp.eq.f32.partialorder %v105, 0.0
    %v118 = vand.u32 %v105, 2147483648
    %v119 = vsel %vm117, %v118, %v116
    %v120 = vmul.f32 %v104, %v112
    %v121 = vmul.f32 %v105, %v119
    %v122 = vmul.f32 %v76, %v96
    %v123 = vmul.f32 %v77, %v97
    %v124 = vmul.f32 %v122, %v120
    %v125 = vmul.f32 %v123, %v121
    %v126 = vadd.f32 %v124, %v125
    %127 = vst [vmem:[#allocation7] sm:$0xff] %v126
    // Predicated region
    $region18: #{tpu_custom_call.1} parent=1 // pred_check
      _
    $region19: #{tpu_custom_call.1} parent=1 // pred_check_branch
      %129 = sbr.rel (0) target = $region21
    $region20: #{tpu_custom_call.1} parent=1 // pred_region
      %s131 = ssub.s32 128, 128
      %132 = vsyncadd [#allocation4], %s131
      %s134 = sshll.u32 [#allocation7], 4
      %s135 = int_to_ptr.vmem [resolvable:$true] %s134
      %137 = dma.vmem_to_hbm [thread:$0]  %s135, 128, %s2, [#allocation4]
    $region21: #{tpu_custom_call.1} parent=1 // pred_fallthru
      _
    // Predicated region
    $region22: #{tpu_custom_call.1} parent=1 // pred_check
      _
    $region23: #{tpu_custom_call.1} parent=1 // pred_check_branch
      %139 = sbr.rel (0) target = $region25
    $region24: #{tpu_custom_call.1} parent=1 // pred_region
      %140 = dma.done [#allocation4], 128
    $region25: #{tpu_custom_call.1} parent=1 // pred_fallthru
      _
    %141 = vsyncpa [#allocation3], 1
    %142 = vsyncpa [#allocation6], 1
    %143 = vsyncpa [#allocation4], 1

</llo_original>
